<compile_context>
chip_gen: v7x
topology: tpu7x:2x2x1
jax: 0.10.0
libtpu: 0.0.40
codegen_flags: <defaults>
</compile_context>

<pallas_src>
import math

import jax
import jax.numpy as jnp
from jax.experimental import pallas as pl
from jax.experimental.pallas import tpu as pltpu


# ----------------------------------------------------------------------------
# Fused Pallas kernel (no grid: one invocation covers the whole batch)
# ----------------------------------------------------------------------------
def _fused_ddpm_kernel(data_ref, w1_ref, w2_ref, b2_ref, out_ref):
    """data_ref: (3 + 3C + HID, P) f32 stacked slab, P = B*H*W lanes.
         rows 0..2            : sqrtab / sqrtmab / 1-over-sqrtab lane rows
         rows 3..3+C          : clean image x
         rows 3+C..3+2C       : gaussian noise
         rows 3+2C..3+3C      : context
         rows 3+3C..3+3C+HID  : hoisted time-embedding projection (temb@Wt+b1)
       w1_ref: (HID, 2C) bf16   packed [w1x | w1c]
       w2_ref: (C, HID)  bf16
       b2_ref: (C, 1)    f32
       out_ref: (2C, P)  f32    rows 0..C = z_t (eps prediction), rows C..2C = x_0
    """
    C = w2_ref.shape[0]
    HID = w1_ref.shape[0]

    sab = data_ref[0:1, :]                       # (1, P)
    smab = data_ref[1:2, :]                      # (1, P)
    rsab = data_ref[2:3, :]                      # (1, P) = 1/sqrtab (exact, precomputed)

    x = data_ref[3:3 + C, :]                     # (C, P)
    nz = data_ref[3 + C:3 + 2 * C, :]            # (C, P)
    ctx = data_ref[3 + 2 * C:3 + 3 * C, :]       # (C, P)
    tproj = data_ref[3 + 3 * C:3 + 3 * C + HID, :]   # (HID, P)

    # --- forward noising: x_t = sqrtab*x + sqrtmab*noise (stays in VMEM) ---
    x_t = sab * x + smab * nz                                    # (C, P) f32

    # --- stand-in Unet: fused pointwise mixing, pixels+batch on lanes ---
    xt_ctx = jnp.concatenate([x_t, ctx], axis=0)                 # (2C, P)
    h = jnp.dot(w1_ref[...], xt_ctx.astype(jnp.bfloat16),
                preferred_element_type=jnp.float32) + tproj      # (HID, P) f32
    h = jax.nn.gelu(h)
    z = jnp.dot(w2_ref[...], h.astype(jnp.bfloat16),
                preferred_element_type=jnp.float32) + b2_ref[...]  # (C, P) f32

    # --- stacked output: [z_t ; x_0], x_0 = (x_t - sqrtmab*z) * (1/sqrtab) ---
    out_ref[0:C, :] = z
    out_ref[C:2 * C, :] = (x_t - smab * z) * rsab


# ----------------------------------------------------------------------------
# Schedules / embeddings / params
# ----------------------------------------------------------------------------
def ddpm_schedules(beta1, beta2, T):
    """Mirror of ModelDiffusionBase.ddpm_schedules (float32)."""
    t = jnp.arange(0, T + 1, dtype=jnp.float32)
    beta_t = (beta2 - beta1) * t / T + beta1
    sqrt_beta_t = jnp.sqrt(beta_t)
    alpha_t = 1.0 - beta_t
    log_alpha_t = jnp.log(alpha_t)
    alphabar_t = jnp.exp(jnp.cumsum(log_alpha_t))
    sqrtab = jnp.sqrt(alphabar_t)
    oneover_sqrta = 1.0 / jnp.sqrt(alpha_t)
    sqrtmab = jnp.sqrt(1.0 - alphabar_t)
    mab_over_sqrtmab = (1.0 - alpha_t) / sqrtmab
    return dict(alpha_t=alpha_t, oneover_sqrta=oneover_sqrta,
                sqrt_beta_t=sqrt_beta_t, alphabar_t=alphabar_t,
                sqrtab=sqrtab, sqrtmab=sqrtmab, mab_over_sqrtmab=mab_over_sqrtmab)


def sinusoidal_time_embedding(ts, time_dim):
    half = time_dim // 2
    freqs = jnp.exp(-math.log(10000.0) * jnp.arange(half, dtype=jnp.float32) / half)
    args = ts.astype(jnp.float32)[:, None] * freqs[None, :]
    return jnp.concatenate([jnp.sin(args), jnp.cos(args)], axis=-1)  # (B, time_dim)


def init_predictor_params(key, c, time_dim, hidden):
    """Weights laid out channels-on-sublanes for the pixels-on-lanes kernel."""
    k1, k2, k3, k4 = jax.random.split(key, 4)
    w1x = 0.1 * jax.random.normal(k1, (hidden, c), jnp.float32)      # x_t half of W1
    w1c = 0.1 * jax.random.normal(k2, (hidden, c), jnp.float32)      # context half
    wt = 0.1 * jax.random.normal(k3, (time_dim, hidden), jnp.float32)
    b1 = jnp.zeros((1, hidden), jnp.float32)
    w2 = 0.1 * jax.random.normal(k4, (c, hidden), jnp.float32)
    b2 = jnp.zeros((c, 1), jnp.float32)
    return (w1x, w1c, wt, b1, w2, b2)


# ----------------------------------------------------------------------------
# Forward wrapper (ModelDDPM.forward)
# ----------------------------------------------------------------------------
def model_ddpm_forward(x, context, ts, noise, sched, params, time_dim):
    """Pallas implementation of ModelDDPM.forward.

    x, context, noise: (B, C, H, W) float32 (NCHW, like PyTorch)
    ts:                (B,) int32 in [1, noise_steps]
    returns (x_0, alphabar_t, z_t, noise)
    """
    B, C, H, W = x.shape
    HW = H * W
    P = B * HW                                   # lane width (multiple of 128 here)
    w1x, w1c, wt, b1, w2, b2 = params
    HID = w1x.shape[0]

    sab = sched["sqrtab"][ts]                    # (B,)
    smab = sched["sqrtmab"][ts]                  # (B,)
    alphabar = sched["alphabar_t"][ts]           # (B,)

    # Batch folded onto lanes: (C, B*HW), batch-major along lanes.
    def to_lanes(a):
        return a.reshape(B, C, HW).transpose(1, 0, 2).reshape(C, P)

    # Per-batch scalars expanded to (1, P) lane rows (exact reciprocal precomputed).
    scales = jnp.stack([jnp.repeat(sab, HW),
                        jnp.repeat(smab, HW),
                        jnp.repeat(1.0 / sab, HW)], axis=0)          # (3, P)

    # Hoisted time-embedding projection (independent of HW): (HID, P) row slab.
    temb = sinusoidal_time_embedding(ts, time_dim)                   # (B, TD)
    tproj = temb @ wt + b1                                           # (B, HID)
    tproj_rows = jnp.repeat(tproj.T, HW, axis=1)                     # (HID, P)

    # ONE stacked per-call input slab -> one DMA.
    data = jnp.concatenate(
        [scales, to_lanes(x), to_lanes(noise), to_lanes(context), tproj_rows],
        axis=0)                                                      # (3+3C+HID, P)

    # Packed / bf16 weights (single-pass MXU operands).
    w1 = jnp.concatenate([w1x, w1c], axis=1).astype(jnp.bfloat16)    # (HID, 2C)
    w2b = w2.astype(jnp.bfloat16)                                    # (C, HID)

    vmem = pl.BlockSpec(memory_space=pltpu.MemorySpace.VMEM)
    out = pl.pallas_call(
        _fused_ddpm_kernel,
        out_shape=jax.ShapeDtypeStruct((2 * C, P), jnp.float32),
        in_specs=[vmem, vmem, vmem, vmem],
        out_specs=vmem,
    )(data, w1, w2b, b2)

    def from_lanes(a):                           # (C, P) -> (B, C, H, W)
        return a.reshape(C, B, HW).transpose(1, 0, 2).reshape(B, C, H, W)

    z_t = from_lanes(out[:C])
    x_0 = from_lanes(out[C:])
    return x_0, alphabar, z_t, noise


# Pure-JAX reference of the same forward pass (f32, HIGHEST precision).
def _reference_forward(x, context, ts, noise, sched, params, time_dim):
    B, C, H, W = x.shape
    w1x, w1c, wt, b1, w2, b2 = params
    sab = sched["sqrtab"][ts][:, None, None, None]
    smab = sched["sqrtmab"][ts][:, None, None, None]
    x_t = sab * x + smab * noise
    temb = sinusoidal_time_embedding(ts, time_dim)
    tproj = temb @ wt + b1                                           # (B, HID)
    xt_f = x_t.reshape(B, C, H * W)
    c_f = context.reshape(B, C, H * W)
    hp = jax.lax.Precision.HIGHEST
    h = (jnp.einsum('hc,bcp->bhp', w1x, xt_f, precision=hp)
         + jnp.einsum('hc,bcp->bhp', w1c, c_f, precision=hp)
         + tproj[:, :, None])
    h = jax.nn.gelu(h)
    z = jnp.einsum('oh,bhp->bop', w2, h, precision=hp) + b2[None]
    z_t = z.reshape(B, C, H, W)
    x_0 = (x_t - smab * z_t) / sab
    return x_0, sched["alphabar_t"][ts], z_t, noise


# ----------------------------------------------------------------------------
# Main
# ----------------------------------------------------------------------------
if __name__ == "__main__":
    # Model config (ModelDDPM defaults, small spatial size).
    B, C, H, W = 2, 3, 16, 16
    TIME_DIM = 32
    NOISE_STEPS = 500
    BETA_START, BETA_END = 1e-4, 2e-2
    HIDDEN = 32

    key = jax.random.PRNGKey(0)
    kx, kc, kt, kn, kp = jax.random.split(key, 5)

    x = jax.random.uniform(kx, (B, C, H, W), jnp.float32)        # clean images
    context = jax.random.normal(kc, (B, C, H, W), jnp.float32)   # image-like context
    ts = jax.random.randint(kt, (B,), 1, NOISE_STEPS + 1)        # torch.randint(1, T+1)
    noise = jax.random.normal(kn, (B, C, H, W), jnp.float32)     # torch.randn_like(x)

    sched = ddpm_schedules(BETA_START, BETA_END, NOISE_STEPS)
    params = init_predictor_params(kp, c=C, time_dim=TIME_DIM, hidden=HIDDEN)

    x_0, alphabar_t, z_t, noise_out = model_ddpm_forward(
        x, context, ts, noise, sched, params, TIME_DIM)
    jax.block_until_ready((x_0, alphabar_t, z_t, noise_out))

    # --- checks -------------------------------------------------------------
    x0_r, ab_r, zt_r, _ = _reference_forward(
        x, context, ts, noise, sched, params, TIME_DIM)

    assert x_0.shape == (B, C, H, W)
    assert alphabar_t.shape == (B,)
    assert z_t.shape == (B, C, H, W)
    assert noise_out.shape == (B, C, H, W)
    assert jnp.all(jnp.isfinite(x_0)) and jnp.all(jnp.isfinite(z_t))
    assert jnp.allclose(alphabar_t, ab_r)

    # Noise prediction vs f32 HIGHEST-precision reference.  Tolerance admits
    # the kernel's single-pass bf16 MXU matmuls (K <= 32, O(1) activations).
    assert jnp.allclose(z_t, zt_r, atol=3e-2, rtol=3e-2)

    # Exact check of the f32 noising + x_0 reconstruction arithmetic,
    # isolated from the bf16 network: x_0 must equal (x_t - sqrtmab*z)/sqrtab
    # computed from the kernel's own z_t (1/sqrtab can amplify by >10x).
    sab4 = sched["sqrtab"][ts][:, None, None, None]
    smab4 = sched["sqrtmab"][ts][:, None, None, None]
    x_t_ref = sab4 * x + smab4 * noise
    x0_consistent = (x_t_ref - smab4 * z_t) / sab4
    assert jnp.allclose(x_0, x0_consistent, atol=1e-4, rtol=1e-4)

    # Loose end-to-end x_0 check vs the f32 reference (1/sqrtab amplification).
    assert jnp.allclose(x_0, x0_r, atol=2e-1, rtol=5e-2)

    print("KERNEL_OK")
</pallas_src>

<mosaic_0001>
module attributes {stable_mosaic.version = 11 : i64} {
  func.func @_fused_ddpm_kernel(%arg0: memref<44x512xf32, #tpu.memory_space<vmem>>, %arg1: memref<32x6xbf16, #tpu.memory_space<vmem>>, %arg2: memref<3x32xbf16, #tpu.memory_space<vmem>>, %arg3: memref<3x1xf32, #tpu.memory_space<vmem>>, %arg4: memref<6x512xf32, #tpu.memory_space<vmem>>) attributes {dimension_semantics = [], scalar_prefetch = 0 : i64, scratch_operands = 0 : i64, tpu.core_type = #tpu.core_type<tc>} {
    %c0 = arith.constant 0 : index
    %c0_0 = arith.constant 0 : index
    %0 = vector.load %arg0[%c0, %c0_0] : memref<44x512xf32, #tpu.memory_space<vmem>>, vector<1x512xf32>
    %c1 = arith.constant 1 : index
    %c0_1 = arith.constant 0 : index
    %1 = vector.load %arg0[%c1, %c0_1] : memref<44x512xf32, #tpu.memory_space<vmem>>, vector<1x512xf32>
    %c2 = arith.constant 2 : index
    %c0_2 = arith.constant 0 : index
    %2 = vector.load %arg0[%c2, %c0_2] : memref<44x512xf32, #tpu.memory_space<vmem>>, vector<1x512xf32>
    %c3 = arith.constant 3 : index
    %c0_3 = arith.constant 0 : index
    %3 = vector.load %arg0[%c3, %c0_3] : memref<44x512xf32, #tpu.memory_space<vmem>>, vector<3x512xf32>
    %c6 = arith.constant 6 : index
    %c0_4 = arith.constant 0 : index
    %4 = vector.load %arg0[%c6, %c0_4] : memref<44x512xf32, #tpu.memory_space<vmem>>, vector<3x512xf32>
    %c9 = arith.constant 9 : index
    %c0_5 = arith.constant 0 : index
    %5 = vector.load %arg0[%c9, %c0_5] : memref<44x512xf32, #tpu.memory_space<vmem>>, vector<3x512xf32>
    %c12 = arith.constant 12 : index
    %c0_6 = arith.constant 0 : index
    %6 = vector.load %arg0[%c12, %c0_6] : memref<44x512xf32, #tpu.memory_space<vmem>>, vector<32x512xf32>
    %7 = vector.broadcast %0 : vector<1x512xf32> to vector<3x512xf32>
    %8 = arith.mulf %7, %3 : vector<3x512xf32>
    %9 = vector.broadcast %1 : vector<1x512xf32> to vector<3x512xf32>
    %10 = arith.mulf %9, %4 : vector<3x512xf32>
    %11 = arith.addf %8, %10 : vector<3x512xf32>
    %12 = tpu.concatenate %11, %5 in 0 : vector<3x512xf32>, vector<3x512xf32> -> vector<6x512xf32>
    %c0_7 = arith.constant 0 : index
    %c0_8 = arith.constant 0 : index
    %13 = vector.load %arg1[%c0_7, %c0_8] : memref<32x6xbf16, #tpu.memory_space<vmem>>, vector<32x6xbf16>
    %14 = arith.truncf %12 : vector<6x512xf32> to vector<6x512xbf16>
    %cst = arith.constant dense<0.000000e+00> : vector<32x512xf32>
    %15 = tpu.matmul %13, %14, %cst {dimension_numbers = #tpu.dot_dimension_numbers<[1], [0], [0], [1], [0, 0, 1, 1], [], []>} : vector<32x6xbf16>, vector<6x512xbf16>, vector<32x512xf32> -> vector<32x512xf32>
    %16 = arith.addf %15, %6 : vector<32x512xf32>
    %17 = arith.mulf %16, %16 : vector<32x512xf32>
    %18 = arith.mulf %16, %17 : vector<32x512xf32>
    %cst_9 = arith.constant 4.471500e-02 : f32
    %19 = vector.broadcast %cst_9 : f32 to vector<32x512xf32>
    %20 = arith.mulf %19, %18 : vector<32x512xf32>
    %21 = arith.addf %16, %20 : vector<32x512xf32>
    %cst_10 = arith.constant 0.797884583 : f32
    %22 = vector.broadcast %cst_10 : f32 to vector<32x512xf32>
    %23 = arith.mulf %22, %21 : vector<32x512xf32>
    %24 = math.tanh %23 : vector<32x512xf32>
    %cst_11 = arith.constant 1.000000e+00 : f32
    %25 = vector.broadcast %cst_11 : f32 to vector<32x512xf32>
    %26 = arith.addf %25, %24 : vector<32x512xf32>
    %cst_12 = arith.constant 5.000000e-01 : f32
    %27 = vector.broadcast %cst_12 : f32 to vector<32x512xf32>
    %28 = arith.mulf %27, %26 : vector<32x512xf32>
    %29 = arith.mulf %16, %28 : vector<32x512xf32>
    %c0_13 = arith.constant 0 : index
    %c0_14 = arith.constant 0 : index
    %30 = vector.load %arg2[%c0_13, %c0_14] : memref<3x32xbf16, #tpu.memory_space<vmem>>, vector<3x32xbf16>
    %31 = arith.truncf %29 : vector<32x512xf32> to vector<32x512xbf16>
    %cst_15 = arith.constant dense<0.000000e+00> : vector<3x512xf32>
    %32 = tpu.matmul %30, %31, %cst_15 {dimension_numbers = #tpu.dot_dimension_numbers<[1], [0], [0], [1], [0, 0, 1, 1], [], []>} : vector<3x32xbf16>, vector<32x512xbf16>, vector<3x512xf32> -> vector<3x512xf32>
    %c0_16 = arith.constant 0 : index
    %c0_17 = arith.constant 0 : index
    %33 = vector.load %arg3[%c0_16, %c0_17] : memref<3x1xf32, #tpu.memory_space<vmem>>, vector<3x1xf32>
    %34 = vector.broadcast %33 : vector<3x1xf32> to vector<3x512xf32>
    %35 = arith.addf %32, %34 : vector<3x512xf32>
    %c0_18 = arith.constant 0 : index
    %c0_19 = arith.constant 0 : index
    %36 = vector.load %arg4[%c0_18, %c0_19] : memref<6x512xf32, #tpu.memory_space<vmem>>, vector<3x512xf32>
    tpu.vector_store %arg4[%c0_18, %c0_19], %35 {strides = array<i32>} : memref<6x512xf32, #tpu.memory_space<vmem>>, vector<3x512xf32>,
    %37 = vector.broadcast %1 : vector<1x512xf32> to vector<3x512xf32>
    %38 = arith.mulf %37, %35 : vector<3x512xf32>
    %39 = arith.subf %11, %38 : vector<3x512xf32>
    %40 = vector.broadcast %2 : vector<1x512xf32> to vector<3x512xf32>
    %41 = arith.mulf %39, %40 : vector<3x512xf32>
    %c3_20 = arith.constant 3 : index
    %c0_21 = arith.constant 0 : index
    %42 = vector.load %arg4[%c3_20, %c0_21] : memref<6x512xf32, #tpu.memory_space<vmem>>, vector<3x512xf32>
    tpu.vector_store %arg4[%c3_20, %c0_21], %41 {strides = array<i32>} : memref<6x512xf32, #tpu.memory_space<vmem>>, vector<3x512xf32>,
    return
  }
}

</mosaic_0001>

<llo_original>
// kernel: tpu_custom_call.1
$region0: #{tpu_custom_call.1}
  #allocation0 [shape = 'u32[]', space=smem, size = 0x4, offset = 0x4, fixed_abs, tag = 'smem constant byte address 0x4 - core index']
  #allocation1 [shape = 'u32[144,128]{1,0:T(1,128)}', space=vmem, size = 0x12000, scoped, tag = 'internal scratch']
  %s0 = inlined_call_operand.hbm [shape: f32[44,512], index: 0, kind: input, shape index: {}]
  %s1 = inlined_call_operand.vmem [shape: bf16[32,6], index: 1, kind: input, shape index: {}]
  %s2 = inlined_call_operand.vmem [shape: bf16[3,32], index: 2, kind: input, shape index: {}]
  %s3 = inlined_call_operand.vmem [shape: f32[3,1], index: 3, kind: input, shape index: {}]
  %s4 = inlined_call_operand.hbm [shape: f32[6,512], index: 4, kind: output, shape index: {}]
  %s5 = sld [smem:[#allocation0]]
  $region30: #{tpu_custom_call.1} parent=0
    _
  %s7 = ssub.s32 1, %s5
  %s8 = scalar_select 0, %s7, %s5
  $region1: #{tpu_custom_call.1} parent=0
    #allocation2 [shape = 'u8[98304]{0}', space=vmem, size = 0x18000, scoped, tag = 'input window, operand 0, single buffered']
    #allocation3 [shape = 's32[1]{0}', space=sflag, size = 0x4, scoped, tag = 'scoped memory for tpu_custom_call.1']
    #allocation4 [shape = 's32[1]{0}', space=sflag, size = 0x4, scoped, tag = 'scoped memory for tpu_custom_call.1']
    #allocation5 [shape = 'u8[16384]{0}', space=vmem, size = 0x4000, scoped, tag = 'output window, operand 0, single buffered']
    %9 = vsyncpa [#allocation3], 0
    %10 = vsyncpa [#allocation4], 0
    // Predicated region
    $region2: #{tpu_custom_call.1} parent=1 // pred_check
      _
    $region3: #{tpu_custom_call.1} parent=1 // pred_check_branch
      %12 = sbr.rel (0) target = $region5
    $region4: #{tpu_custom_call.1} parent=1 // pred_region
      %s14 = ssub.s32 3072, 3072
      %15 = vsyncadd [#allocation3], %s14
      %s16 = sshll.u32 [#allocation2], 4
      %s17 = int_to_ptr.vmem [resolvable:$true] %s16
      %22 = dma.hbm_to_vmem [thread:$0]  %s0, 3072, %s17, [#allocation3], 512, 512, 32
    $region5: #{tpu_custom_call.1} parent=1 // pred_fallthru
      _
    // Predicated region
    $region6: #{tpu_custom_call.1} parent=1 // pred_check
      _
    $region7: #{tpu_custom_call.1} parent=1 // pred_check_branch
      %24 = sbr.rel (0) target = $region9
    $region8: #{tpu_custom_call.1} parent=1 // pred_region
      _
    $region9: #{tpu_custom_call.1} parent=1 // pred_fallthru
      _
    // Predicated region
    $region10: #{tpu_custom_call.1} parent=1 // pred_check
      _
    $region11: #{tpu_custom_call.1} parent=1 // pred_check_branch
      %26 = sbr.rel (0) target = $region13
    $region12: #{tpu_custom_call.1} parent=1 // pred_region
      _
    $region13: #{tpu_custom_call.1} parent=1 // pred_fallthru
      _
    // Predicated region
    $region14: #{tpu_custom_call.1} parent=1 // pred_check
      _
    $region15: #{tpu_custom_call.1} parent=1 // pred_check_branch
      %28 = sbr.rel (0) target = $region17
    $region16: #{tpu_custom_call.1} parent=1 // pred_region
      _
    $region17: #{tpu_custom_call.1} parent=1 // pred_fallthru
      _
    // Predicated region
    $region18: #{tpu_custom_call.1} parent=1 // pred_check
      _
    $region19: #{tpu_custom_call.1} parent=1 // pred_check_branch
      %30 = sbr.rel (0) target = $region21
    $region20: #{tpu_custom_call.1} parent=1 // pred_region
      %31 = dma.done [#allocation3], 3072
    $region21: #{tpu_custom_call.1} parent=1 // pred_fallthru
      _
    %v33 = vld [vmem:[#allocation2] ss:$8 sm:$0xf]
    %s34 = scalar_lea.vmem [#allocation2], 1
    %v35 = vld [vmem:[%s34] ss:$8 sm:$0xf]
    %s36 = scalar_lea.vmem [#allocation2], 2
    %v37 = vld [vmem:[%s36] ss:$8 sm:$0xf]
    %v38 = vld [vmem:[#allocation2] sm:$0x38]
    %v39 = vld [vmem:[#allocation2 + $0x8] sm:$0x38]
    %v40 = vld [vmem:[#allocation2 + $0x10] sm:$0x38]
    %v41 = vld [vmem:[#allocation2 + $0x18] sm:$0x38]
    %v42 = vld [vmem:[#allocation2] sm:$0xc0]
    %v43 = vld [vmem:[#allocation2 + $0x8] sm:$0xc0]
    %v44 = vld [vmem:[#allocation2 + $0x10] sm:$0xc0]
    %v45 = vld [vmem:[#allocation2 + $0x18] sm:$0xc0]
    %v46 = vld [vmem:[#allocation2 + $0x20] sm:$0x1]
    %v47 = vld [vmem:[#allocation2 + $0x28] sm:$0x1]
    %v48 = vld [vmem:[#allocation2 + $0x30] sm:$0x1]
    %v49 = vld [vmem:[#allocation2 + $0x38] sm:$0x1]
    %v50 = vld [vmem:[#allocation2 + $0x20] sm:$0xe]
    %v51 = vld [vmem:[#allocation2 + $0x28] sm:$0xe]
    %v52 = vld [vmem:[#allocation2 + $0x30] sm:$0xe]
    %v53 = vld [vmem:[#allocation2 + $0x38] sm:$0xe]
    %v54 = vld [vmem:[#allocation2 + $0x20] sm:$0xf0]
    %v55 = vld [vmem:[#allocation2 + $0x28] sm:$0xf0]
    %v56 = vld [vmem:[#allocation2 + $0x30] sm:$0xf0]
    %v57 = vld [vmem:[#allocation2 + $0x38] sm:$0xf0]
    %v58 = vld [vmem:[#allocation2 + $0x40] sm:$0xff]
    %v59 = vld [vmem:[#allocation2 + $0x48] sm:$0xff]
    %v60 = vld [vmem:[#allocation2 + $0x50] sm:$0xff]
    %v61 = vld [vmem:[#allocation2 + $0x58] sm:$0xff]
    %v62 = vld [vmem:[#allocation2 + $0x60] sm:$0xff]
    %v63 = vld [vmem:[#allocation2 + $0x68] sm:$0xff]
    %v64 = vld [vmem:[#allocation2 + $0x70] sm:$0xff]
    %v65 = vld [vmem:[#allocation2 + $0x78] sm:$0xff]
    %v66 = vld [vmem:[#allocation2 + $0x80] sm:$0xff]
    %v67 = vld [vmem:[#allocation2 + $0x88] sm:$0xff]
    %v68 = vld [vmem:[#allocation2 + $0x90] sm:$0xff]
    %v69 = vld [vmem:[#allocation2 + $0x98] sm:$0xff]
    %v70 = vld [vmem:[#allocation2 + $0xa0] sm:$0xf]
    %v71 = vld [vmem:[#allocation2 + $0xa8] sm:$0xf]
    %v72 = vld [vmem:[#allocation2 + $0xb0] sm:$0xf]
    %v73 = vld [vmem:[#allocation2 + $0xb8] sm:$0xf]
    %v75 = vlaneseq
    %v76 = vshrl.u32 %v75, 7
    %v77 = vsub.s32 0, %v76
    %v78 = vrot.slane %v33, %v77
    %v79 = vlaneseq
    %v80 = vshrl.u32 %v79, 7
    %v81 = vsub.s32 1, %v80
    %v82 = vrot.slane %v33, %v81
    %v83 = vlaneseq
    %v84 = vshrl.u32 %v83, 7
    %v85 = vsub.s32 2, %v84
    %v86 = vrot.slane %v33, %v85
    %v87 = vlaneseq
    %v88 = vshrl.u32 %v87, 7
    %v89 = vsub.s32 3, %v88
    %v90 = vrot.slane %v33, %v89
    %v95 = vmul.f32 %v78, %v38
    %v96 = vmul.f32 %v82, %v39
    %v97 = vmul.f32 %v86, %v40
    %v98 = vmul.f32 %v90, %v41
    %v100 = vlaneseq
    %v101 = vshrl.u32 %v100, 7
    %v102 = vsub.s32 0, %v101
    %v103 = vrot.slane %v35, %v102
    %v104 = vlaneseq
    %v105 = vshrl.u32 %v104, 7
    %v106 = vsub.s32 1, %v105
    %v107 = vrot.slane %v35, %v106
    %v108 = vlaneseq
    %v109 = vshrl.u32 %v108, 7
    %v110 = vsub.s32 2, %v109
    %v111 = vrot.slane %v35, %v110
    %v112 = vlaneseq
    %v113 = vshrl.u32 %v112, 7
    %v114 = vsub.s32 3, %v113
    %v115 = vrot.slane %v35, %v114
    %v120 = vmul.f32 %v103, %v42
    %v121 = vmul.f32 %v107, %v43
    %v122 = vmul.f32 %v111, %v44
    %v123 = vmul.f32 %v115, %v45
    %v124 = vmul.f32 %v103, %v46
    %v125 = vmul.f32 %v107, %v47
    %v126 = vmul.f32 %v111, %v48
    %v127 = vmul.f32 %v115, %v49
    %vm136 = vcmask 1044480
    %v137 = vrot.slane %v120, 3
    %v138 = vrot.slane %v124, 3
    %v139 = vsel %vm136, %v137, %v138
    %v140 = vrot.slane %v121, 3
    %v141 = vrot.slane %v125, 3
    %v142 = vsel %vm136, %v140, %v141
    %v143 = vrot.slane %v122, 3
    %v144 = vrot.slane %v126, 3
    %v145 = vsel %vm136, %v143, %v144
    %v146 = vrot.slane %v123, 3
    %v147 = vrot.slane %v127, 3
    %v148 = vsel %vm136, %v146, %v147
    %v153 = vadd.f32 %v95, %v139
    %v154 = vadd.f32 %v96, %v142
    %v155 = vadd.f32 %v97, %v145
    %v156 = vadd.f32 %v98, %v148
    %v161 = vrot.slane %v153, 3
    %v162 = vrot.slane %v154, 3
    %v163 = vrot.slane %v155, 3
    %v164 = vrot.slane %v156, 3
    %v173 = vrot.slane %v50, 6
    %v174 = vrot.slane %v51, 6
    %v175 = vrot.slane %v52, 6
    %v176 = vrot.slane %v53, 6
    %vm181 = vcmask 1042432
    %v182 = vsel %vm181, %v161, %v173
    %v183 = vsel %vm181, %v162, %v174
    %v184 = vsel %vm181, %v163, %v175
    %v185 = vsel %vm181, %v164, %v176
    %v186 = vld [vmem:[%s1] sm:$0xf]
    %v187 = vld [vmem:[%s1 + $0x4] sm:$0xf]
    %v188 = vld [vmem:[%s1 + $0x8] sm:$0xf]
    %v189 = vld [vmem:[%s1 + $0xc] sm:$0xf]
    %v190 = vpack.c.bf16 %v182, %v182
    %v191 = vpack.c.bf16 %v183, %v183
    %v192 = vpack.c.bf16 %v184, %v184
    %v193 = vpack.c.bf16 %v185, %v185
    %v198 = vunpack.c.l.b16 %v186
    %v199 = vunpack.c.l.b16 %v187
    %v200 = vunpack.c.l.b16 %v188
    %v201 = vunpack.c.l.b16 %v189
    %v202 = vpack.c.b16 %v199, %v198
    %v203 = vpack.c.b16 %v201, %v200
    %vm224 = vcmask 1043456
    %v225 = vrot.slane %v54, 4
    %v226 = vrot.slane %v58, 4
    %v227 = vsel %vm224, %v225, %v226
    %v228 = vrot.slane %v55, 4
    %v229 = vrot.slane %v59, 4
    %v230 = vsel %vm224, %v228, %v229
    %v231 = vrot.slane %v56, 4
    %v232 = vrot.slane %v60, 4
    %v233 = vsel %vm224, %v231, %v232
    %v234 = vrot.slane %v57, 4
    %v235 = vrot.slane %v61, 4
    %v236 = vsel %vm224, %v234, %v235
    %v237 = vrot.slane %v62, 4
    %v238 = vsel %vm224, %v226, %v237
    %v239 = vrot.slane %v63, 4
    %v240 = vsel %vm224, %v229, %v239
    %v241 = vrot.slane %v64, 4
    %v242 = vsel %vm224, %v232, %v241
    %v243 = vrot.slane %v65, 4
    %v244 = vsel %vm224, %v235, %v243
    %v245 = vrot.slane %v66, 4
    %v246 = vsel %vm224, %v237, %v245
    %v247 = vrot.slane %v67, 4
    %v248 = vsel %vm224, %v239, %v247
    %v249 = vrot.slane %v68, 4
    %v250 = vsel %vm224, %v241, %v249
    %v251 = vrot.slane %v69, 4
    %v252 = vsel %vm224, %v243, %v251
    %v253 = vrot.slane %v70, 4
    %v254 = vsel %vm224, %v245, %v253
    %v255 = vrot.slane %v71, 4
    %v256 = vsel %vm224, %v247, %v255
    %v257 = vrot.slane %v72, 4
    %v258 = vsel %vm224, %v249, %v257
    %v259 = vrot.slane %v73, 4
    %v260 = vsel %vm224, %v251, %v259
    %vm277 = vcmask 48128
    %v279 = vsel %vm277, %v202, 0
    %v282 = vsel %vm277, %v203, 0
    %v285 = vsel %vm181, %v190, 0
    %v288 = vsel %vm181, %v191, 0
    %v291 = vsel %vm181, %v192, 0
    %v294 = vsel %vm181, %v193, 0
    %296 = vmatprep.subr.bf16.mxu0 %v288
    %297 = vmatpush1.bf16.msra.mxu0 %v285
    %298 = vmatprep.subr.bf16.mxu0 0
    %299 = vmatpush1.bf16.msra.mxu0 0
    %300 = vmatprep.subr.bf16.mxu0 0
    %301 = vmatpush1.bf16.msra.mxu0 0
    %302 = vmatprep.subr.bf16.mxu0 0
    %303 = vmatpush1.bf16.msra.mxu0 0
    %304 = vmatprep.subr.bf16.mxu0 0
    %305 = vmatpush1.bf16.msra.mxu0 0
    %306 = vmatprep.subr.bf16.mxu0 0
    %307 = vmatpush1.bf16.msra.mxu0 0
    %308 = vmatprep.subr.bf16.mxu0 0
    %309 = vmatpush1.bf16.msra.mxu0 0
    %310 = vmatprep.subr.bf16.mxu0 0
    %311 = vmatpush1.bf16.msra.mxu0 0
    %312 = vmatprep.subr.bf16.mxu0 0
    %313 = vmatpush1.bf16.msra.mxu0 0
    %314 = vmatprep.subr.bf16.mxu0 0
    %315 = vmatpush1.bf16.msra.mxu0 0
    %316 = vmatprep.subr.bf16.mxu0 0
    %317 = vmatpush1.bf16.msra.mxu0 0
    %318 = vmatprep.subr.bf16.mxu0 0
    %319 = vmatpush1.bf16.msra.mxu0 0
    %320 = vmatprep.subr.bf16.mxu0 0
    %321 = vmatpush1.bf16.msra.mxu0 0
    %322 = vmatprep.subr.bf16.mxu0 0
    %323 = vmatpush1.bf16.msra.mxu0 0
    %324 = vmatprep.subr.bf16.mxu0 0
    %325 = vmatpush1.bf16.msra.mxu0 0
    %326 = vmatprep.subr.bf16.mxu0 0
    %327 = vmatpush1.bf16.msra.mxu0 0
    %328 = vmatprep.mubr.bf16.mxu0 0
    %329 = vmatmul.mubr.bf16.gmra.mrb[0].mxu0 %v279
    %v330 = vpop.f32.mrb[0].mxu0
    %v331 = vadd.f32 %v227, %v330
    %v332 = vpop.f32.mrb[0].mxu0
    %v333 = vadd.f32 %v230, %v332
    %v334 = vpop.f32.mrb[0].mxu0
    %v335 = vadd.f32 %v238, %v334
    %v336 = vpop.f32.mrb[0].mxu0
    %v337 = vadd.f32 %v240, %v336
    %338 = vmatprep.mubr.bf16.mxu0 0
    %339 = vmatmul.mubr.bf16.gmra.mrb[0].mxu0 %v282
    %v340 = vpop.f32.mrb[0].mxu0
    %v341 = vadd.f32 %v246, %v340
    %v342 = vpop.f32.mrb[0].mxu0
    %v343 = vadd.f32 %v248, %v342
    %v344 = vpop.f32.mrb[0].mxu0
    %v345 = vadd.f32 %v254, %v344
    %v346 = vpop.f32.mrb[0].mxu0
    %v347 = vadd.f32 %v256, %v346
    %348 = vdwg.mxu0
    %349 = vmatprep.subr.bf16.mxu0 %v294
    %350 = vmatpush1.bf16.msra.mxu0 %v291
    %351 = vmatprep.subr.bf16.mxu0 0
    %352 = vmatpush1.bf16.msra.mxu0 0
    %353 = vmatprep.subr.bf16.mxu0 0
    %354 = vmatpush1.bf16.msra.mxu0 0
    %355 = vmatprep.subr.bf16.mxu0 0
    %356 = vmatpush1.bf16.msra.mxu0 0
    %357 = vmatprep.subr.bf16.mxu0 0
    %358 = vmatpush1.bf16.msra.mxu0 0
    %359 = vmatprep.subr.bf16.mxu0 0
    %360 = vmatpush1.bf16.msra.mxu0 0
    %361 = vmatprep.subr.bf16.mxu0 0
    %362 = vmatpush1.bf16.msra.mxu0 0
    %363 = vmatprep.subr.bf16.mxu0 0
    %364 = vmatpush1.bf16.msra.mxu0 0
    %365 = vmatprep.subr.bf16.mxu0 0
    %366 = vmatpush1.bf16.msra.mxu0 0
    %367 = vmatprep.subr.bf16.mxu0 0
    %368 = vmatpush1.bf16.msra.mxu0 0
    %369 = vmatprep.subr.bf16.mxu0 0
    %370 = vmatpush1.bf16.msra.mxu0 0
    %371 = vmatprep.subr.bf16.mxu0 0
    %372 = vmatpush1.bf16.msra.mxu0 0
    %373 = vmatprep.subr.bf16.mxu0 0
    %374 = vmatpush1.bf16.msra.mxu0 0
    %375 = vmatprep.subr.bf16.mxu0 0
    %376 = vmatpush1.bf16.msra.mxu0 0
    %377 = vmatprep.subr.bf16.mxu0 0
    %378 = vmatpush1.bf16.msra.mxu0 0
    %379 = vmatprep.subr.bf16.mxu0 0
    %380 = vmatpush1.bf16.msra.mxu0 0
    %381 = vmatprep.mubr.bf16.mxu0 0
    %382 = vmatmul.mubr.bf16.gmra.mrb[0].mxu0 %v279
    %v383 = vpop.f32.mrb[0].mxu0
    %v384 = vadd.f32 %v233, %v383
    %v385 = vpop.f32.mrb[0].mxu0
    %v386 = vadd.f32 %v236, %v385
    %v387 = vpop.f32.mrb[0].mxu0
    %v388 = vadd.f32 %v242, %v387
    %v389 = vpop.f32.mrb[0].mxu0
    %v390 = vadd.f32 %v244, %v389
    %391 = vmatprep.mubr.bf16.mxu0 0
    %392 = vmatmul.mubr.bf16.gmra.mrb[0].mxu0 %v282
    %v393 = vpop.f32.mrb[0].mxu0
    %v394 = vadd.f32 %v250, %v393
    %v395 = vpop.f32.mrb[0].mxu0
    %v396 = vadd.f32 %v252, %v395
    %v397 = vpop.f32.mrb[0].mxu0
    %v398 = vadd.f32 %v258, %v397
    %v399 = vpop.f32.mrb[0].mxu0
    %v400 = vadd.f32 %v260, %v399
    %401 = vdwg.mxu0
    %v402 = vmul.f32 %v331, %v331
    %v403 = vmul.f32 %v333, %v333
    %v404 = vmul.f32 %v384, %v384
    %v405 = vmul.f32 %v386, %v386
    %v406 = vmul.f32 %v335, %v335
    %v407 = vmul.f32 %v337, %v337
    %v408 = vmul.f32 %v388, %v388
    %v409 = vmul.f32 %v390, %v390
    %v410 = vmul.f32 %v341, %v341
    %v411 = vmul.f32 %v343, %v343
    %v412 = vmul.f32 %v394, %v394
    %v413 = vmul.f32 %v396, %v396
    %v414 = vmul.f32 %v345, %v345
    %v415 = vmul.f32 %v347, %v347
    %v416 = vmul.f32 %v398, %v398
    %v417 = vmul.f32 %v400, %v400
    %v418 = vmul.f32 %v331, %v402
    %v419 = vmul.f32 %v333, %v403
    %v420 = vmul.f32 %v384, %v404
    %v421 = vmul.f32 %v386, %v405
    %v422 = vmul.f32 %v335, %v406
    %v423 = vmul.f32 %v337, %v407
    %v424 = vmul.f32 %v388, %v408
    %v425 = vmul.f32 %v390, %v409
    %v426 = vmul.f32 %v341, %v410
    %v427 = vmul.f32 %v343, %v411
    %v428 = vmul.f32 %v394, %v412
    %v429 = vmul.f32 %v396, %v413
    %v430 = vmul.f32 %v345, %v414
    %v431 = vmul.f32 %v347, %v415
    %v432 = vmul.f32 %v398, %v416
    %v433 = vmul.f32 %v400, %v417
    %v434 = vmul.f32 %v418, 0.044715
    %v435 = vmul.f32 %v419, 0.044715
    %v436 = vmul.f32 %v420, 0.044715
    %v437 = vmul.f32 %v421, 0.044715
    %v438 = vmul.f32 %v422, 0.044715
    %v439 = vmul.f32 %v423, 0.044715
    %v440 = vmul.f32 %v424, 0.044715
    %v441 = vmul.f32 %v425, 0.044715
    %v442 = vmul.f32 %v426, 0.044715
    %v443 = vmul.f32 %v427, 0.044715
    %v444 = vmul.f32 %v428, 0.044715
    %v445 = vmul.f32 %v429, 0.044715
    %v446 = vmul.f32 %v430, 0.044715
    %v447 = vmul.f32 %v431, 0.044715
    %v448 = vmul.f32 %v432, 0.044715
    %v449 = vmul.f32 %v433, 0.044715
    %v450 = vadd.f32 %v331, %v434
    %v451 = vadd.f32 %v333, %v435
    %v452 = vadd.f32 %v384, %v436
    %v453 = vadd.f32 %v386, %v437
    %v454 = vadd.f32 %v335, %v438
    %v455 = vadd.f32 %v337, %v439
    %v456 = vadd.f32 %v388, %v440
    %v457 = vadd.f32 %v390, %v441
    %v458 = vadd.f32 %v341, %v442
    %v459 = vadd.f32 %v343, %v443
    %v460 = vadd.f32 %v394, %v444
    %v461 = vadd.f32 %v396, %v445
    %v462 = vadd.f32 %v345, %v446
    %v463 = vadd.f32 %v347, %v447
    %v464 = vadd.f32 %v398, %v448
    %v465 = vadd.f32 %v400, %v449
    %v466 = vmul.f32 %v450, 0.7978846
    %v467 = vmul.f32 %v451, 0.7978846
    %v468 = vmul.f32 %v452, 0.7978846
    %v469 = vmul.f32 %v453, 0.7978846
    %v470 = vmul.f32 %v454, 0.7978846
    %v471 = vmul.f32 %v455, 0.7978846
    %v472 = vmul.f32 %v456, 0.7978846
    %v473 = vmul.f32 %v457, 0.7978846
    %v474 = vmul.f32 %v458, 0.7978846
    %v475 = vmul.f32 %v459, 0.7978846
    %v476 = vmul.f32 %v460, 0.7978846
    %v477 = vmul.f32 %v461, 0.7978846
    %v478 = vmul.f32 %v462, 0.7978846
    %v479 = vmul.f32 %v463, 0.7978846
    %v480 = vmul.f32 %v464, 0.7978846
    %v481 = vmul.f32 %v465, 0.7978846
    %v482 = vtanh.pop %v466
    %v483 = vtanh.pop %v467
    %v484 = vtanh.pop %v468
    %v485 = vtanh.pop %v469
    %v486 = vtanh.pop %v470
    %v487 = vtanh.pop %v471
    %v488 = vtanh.pop %v472
    %v489 = vtanh.pop %v473
    %v490 = vtanh.pop %v474
    %v491 = vtanh.pop %v475
    %v492 = vtanh.pop %v476
    %v493 = vtanh.pop %v477
    %v494 = vtanh.pop %v478
    %v495 = vtanh.pop %v479
    %v496 = vtanh.pop %v480
    %v497 = vtanh.pop %v481
    %v498 = vadd.f32 %v482, 1.0
    %v499 = vadd.f32 %v483, 1.0
    %v500 = vadd.f32 %v484, 1.0
    %v501 = vadd.f32 %v485, 1.0
    %v502 = vadd.f32 %v486, 1.0
    %v503 = vadd.f32 %v487, 1.0
    %v504 = vadd.f32 %v488, 1.0
    %v505 = vadd.f32 %v489, 1.0
    %v506 = vadd.f32 %v490, 1.0
    %v507 = vadd.f32 %v491, 1.0
    %v508 = vadd.f32 %v492, 1.0
    %v509 = vadd.f32 %v493, 1.0
    %v510 = vadd.f32 %v494, 1.0
    %v511 = vadd.f32 %v495, 1.0
    %v512 = vadd.f32 %v496, 1.0
    %v513 = vadd.f32 %v497, 1.0
    %v514 = vmul.f32 %v498, 0.5
    %v515 = vmul.f32 %v499, 0.5
    %v516 = vmul.f32 %v500, 0.5
    %v517 = vmul.f32 %v501, 0.5
    %v518 = vmul.f32 %v502, 0.5
    %v519 = vmul.f32 %v503, 0.5
    %v520 = vmul.f32 %v504, 0.5
    %v521 = vmul.f32 %v505, 0.5
    %v522 = vmul.f32 %v506, 0.5
    %v523 = vmul.f32 %v507, 0.5
    %v524 = vmul.f32 %v508, 0.5
    %v525 = vmul.f32 %v509, 0.5
    %v526 = vmul.f32 %v510, 0.5
    %v527 = vmul.f32 %v511, 0.5
    %v528 = vmul.f32 %v512, 0.5
    %v529 = vmul.f32 %v513, 0.5
    %v530 = vmul.f32 %v331, %v514
    %v531 = vmul.f32 %v333, %v515
    %v532 = vmul.f32 %v384, %v516
    %v533 = vmul.f32 %v386, %v517
    %v534 = vmul.f32 %v335, %v518
    %v535 = vmul.f32 %v337, %v519
    %v536 = vmul.f32 %v388, %v520
    %v537 = vmul.f32 %v390, %v521
    %v538 = vmul.f32 %v341, %v522
    %v539 = vmul.f32 %v343, %v523
    %v540 = vmul.f32 %v394, %v524
    %v541 = vmul.f32 %v396, %v525
    %v542 = vmul.f32 %v345, %v526
    %v543 = vmul.f32 %v347, %v527
    %v544 = vmul.f32 %v398, %v528
    %v545 = vmul.f32 %v400, %v529
    %v546 = vld [vmem:[%s2] sm:$0x3]
    %v547 = vpack.c.bf16 %v534, %v530
    %v548 = vpack.c.bf16 %v535, %v531
    %v549 = vpack.c.bf16 %v536, %v532
    %v550 = vpack.c.bf16 %v537, %v533
    %v551 = vpack.c.bf16 %v542, %v538
    %v552 = vpack.c.bf16 %v543, %v539
    %v553 = vpack.c.bf16 %v544, %v540
    %v554 = vpack.c.bf16 %v545, %v541
    %v555 = vld [vmem:[%s3] sm:$0x7]
    %557 = vset.pattern.permute.xlu0 0
    %558 = vperm.xlu0 %557, %v555
    %v559 = vpop.permute.xlu0 %558
    %vm561 = vcmask 261120
    %v563 = vsel %vm561, %v546, 0
    %565 = vmatprep.subr.bf16.mxu0 %v548
    %566 = vmatpush1.bf16.msra.mxu0 %v547
    %567 = vmatprep.subr.bf16.mxu0 %v552
    %568 = vmatpush1.bf16.msra.mxu0 %v551
    %569 = vmatprep.subr.bf16.mxu0 0
    %570 = vmatpush1.bf16.msra.mxu0 0
    %571 = vmatprep.subr.bf16.mxu0 0
    %572 = vmatpush1.bf16.msra.mxu0 0
    %573 = vmatprep.subr.bf16.mxu0 0
    %574 = vmatpush1.bf16.msra.mxu0 0
    %575 = vmatprep.subr.bf16.mxu0 0
    %576 = vmatpush1.bf16.msra.mxu0 0
    %577 = vmatprep.subr.bf16.mxu0 0
    %578 = vmatpush1.bf16.msra.mxu0 0
    %579 = vmatprep.subr.bf16.mxu0 0
    %580 = vmatpush1.bf16.msra.mxu0 0
    %581 = vmatprep.subr.bf16.mxu0 0
    %582 = vmatpush1.bf16.msra.mxu0 0
    %583 = vmatprep.subr.bf16.mxu0 0
    %584 = vmatpush1.bf16.msra.mxu0 0
    %585 = vmatprep.subr.bf16.mxu0 0
    %586 = vmatpush1.bf16.msra.mxu0 0
    %587 = vmatprep.subr.bf16.mxu0 0
    %588 = vmatpush1.bf16.msra.mxu0 0
    %589 = vmatprep.subr.bf16.mxu0 0
    %590 = vmatpush1.bf16.msra.mxu0 0
    %591 = vmatprep.subr.bf16.mxu0 0
    %592 = vmatpush1.bf16.msra.mxu0 0
    %593 = vmatprep.subr.bf16.mxu0 0
    %594 = vmatpush1.bf16.msra.mxu0 0
    %595 = vmatprep.subr.bf16.mxu0 0
    %596 = vmatpush1.bf16.msra.mxu0 0
    %597 = vmatprep.mubr.bf16.mxu0 0
    %598 = vmatmul.mubr.bf16.gmra.mrb[0].mxu0 %v563
    %v599 = vpop.f32.mrb[0].mxu0
    %v600 = vadd.f32 %v559, %v599
    %v601 = vpop.f32.mrb[0].mxu0
    %v602 = vadd.f32 %v559, %v601
    %v603 = vpop.f32.mrb[0].mxu0
    %v604 = vpop.f32.mrb[0].mxu0
    %605 = vdwg.mxu0
    %606 = vmatprep.subr.bf16.mxu0 %v550
    %607 = vmatpush1.bf16.msra.mxu0 %v549
    %608 = vmatprep.subr.bf16.mxu0 %v554
    %609 = vmatpush1.bf16.msra.mxu0 %v553
    %610 = vmatprep.subr.bf16.mxu0 0
    %611 = vmatpush1.bf16.msra.mxu0 0
    %612 = vmatprep.subr.bf16.mxu0 0
    %613 = vmatpush1.bf16.msra.mxu0 0
    %614 = vmatprep.subr.bf16.mxu0 0
    %615 = vmatpush1.bf16.msra.mxu0 0
    %616 = vmatprep.subr.bf16.mxu0 0
    %617 = vmatpush1.bf16.msra.mxu0 0
    %618 = vmatprep.subr.bf16.mxu0 0
    %619 = vmatpush1.bf16.msra.mxu0 0
    %620 = vmatprep.subr.bf16.mxu0 0
    %621 = vmatpush1.bf16.msra.mxu0 0
    %622 = vmatprep.subr.bf16.mxu0 0
    %623 = vmatpush1.bf16.msra.mxu0 0
    %624 = vmatprep.subr.bf16.mxu0 0
    %625 = vmatpush1.bf16.msra.mxu0 0
    %626 = vmatprep.subr.bf16.mxu0 0
    %627 = vmatpush1.bf16.msra.mxu0 0
    %628 = vmatprep.subr.bf16.mxu0 0
    %629 = vmatpush1.bf16.msra.mxu0 0
    %630 = vmatprep.subr.bf16.mxu0 0
    %631 = vmatpush1.bf16.msra.mxu0 0
    %632 = vmatprep.subr.bf16.mxu0 0
    %633 = vmatpush1.bf16.msra.mxu0 0
    %634 = vmatprep.subr.bf16.mxu0 0
    %635 = vmatpush1.bf16.msra.mxu0 0
    %636 = vmatprep.subr.bf16.mxu0 0
    %637 = vmatpush1.bf16.msra.mxu0 0
    %638 = vmatprep.mubr.bf16.mxu0 0
    %639 = vmatmul.mubr.bf16.gmra.mrb[0].mxu0 %v563
    %v640 = vpop.f32.mrb[0].mxu0
    %v641 = vadd.f32 %v559, %v640
    %v642 = vpop.f32.mrb[0].mxu0
    %v643 = vadd.f32 %v559, %v642
    %v644 = vpop.f32.mrb[0].mxu0
    %v645 = vpop.f32.mrb[0].mxu0
    %646 = vdwg.mxu0
    %647 = vst [vmem:[#allocation5] sm:$0x7] %v600
    %648 = vst [vmem:[#allocation5 + $0x8] sm:$0x7] %v602
    %649 = vst [vmem:[#allocation5 + $0x10] sm:$0x7] %v641
    %650 = vst [vmem:[#allocation5 + $0x18] sm:$0x7] %v643
    %v651 = vmul.f32 %v103, %v600
    %v652 = vmul.f32 %v107, %v602
    %v653 = vmul.f32 %v111, %v641
    %v654 = vmul.f32 %v115, %v643
    %v659 = vrot.slane %v651, 5
    %v660 = vrot.slane %v652, 5
    %v661 = vrot.slane %v653, 5
    %v662 = vrot.slane %v654, 5
    %v667 = vsub.f32 %v153, %v659
    %v668 = vsub.f32 %v154, %v660
    %v669 = vsub.f32 %v155, %v661
    %v670 = vsub.f32 %v156, %v662
    %v672 = vlaneseq
    %v673 = vshrl.u32 %v672, 7
    %v674 = vsub.s32 0, %v673
    %v675 = vrot.slane %v37, %v674
    %v676 = vlaneseq
    %v677 = vshrl.u32 %v676, 7
    %v678 = vsub.s32 1, %v677
    %v679 = vrot.slane %v37, %v678
    %v680 = vlaneseq
    %v681 = vshrl.u32 %v680, 7
    %v682 = vsub.s32 2, %v681
    %v683 = vrot.slane %v37, %v682
    %v684 = vlaneseq
    %v685 = vshrl.u32 %v684, 7
    %v686 = vsub.s32 3, %v685
    %v687 = vrot.slane %v37, %v686
    %v692 = vmul.f32 %v667, %v675
    %v693 = vmul.f32 %v668, %v679
    %v694 = vmul.f32 %v669, %v683
    %v695 = vmul.f32 %v670, %v687
    %696 = vst [vmem:[#allocation5] sm:$0x38] %v692
    %697 = vst [vmem:[#allocation5 + $0x8] sm:$0x38] %v693
    %698 = vst [vmem:[#allocation5 + $0x10] sm:$0x38] %v694
    %699 = vst [vmem:[#allocation5 + $0x18] sm:$0x38] %v695
    // Predicated region
    $region22: #{tpu_custom_call.1} parent=1 // pred_check
      _
    $region23: #{tpu_custom_call.1} parent=1 // pred_check_branch
      %701 = sbr.rel (0) target = $region25
    $region24: #{tpu_custom_call.1} parent=1 // pred_region
      %s703 = ssub.s32 512, 512
      %704 = vsyncadd [#allocation4], %s703
      %s706 = sshll.u32 [#allocation5], 4
      %s707 = int_to_ptr.vmem [resolvable:$true] %s706
      %709 = dma.vmem_to_hbm [thread:$0]  %s707, 512, %s4, [#allocation4]
    $region25: #{tpu_custom_call.1} parent=1 // pred_fallthru
      _
    // Predicated region
    $region26: #{tpu_custom_call.1} parent=1 // pred_check
      _
    $region27: #{tpu_custom_call.1} parent=1 // pred_check_branch
      %711 = sbr.rel (0) target = $region29
    $region28: #{tpu_custom_call.1} parent=1 // pred_region
      %712 = dma.done [#allocation4], 512
    $region29: #{tpu_custom_call.1} parent=1 // pred_fallthru
      _
    %713 = vsyncpa [#allocation3], 1
    %714 = vsyncpa [#allocation4], 1

</llo_original>
